<compile_context>
chip_gen: v7x
topology: tpu7x:2x2x1
jax: 0.10.0
libtpu: 0.0.40
codegen_flags: <defaults>
</compile_context>

<pallas_src>
import jax
import jax.numpy as jnp
from jax.experimental import pallas as pl
from jax.experimental.pallas import tpu as pltpu


def _make_kernel(N, Cin, Cout, K, L):
    L1 = L - K + 1          # length after conv1
    L2 = L1 - K + 1         # length after conv2 (1x1 downsample keeps length)
    NL = N * L
    # Python scalars only -> lowered as literals, never captured constants.
    eps = 1e-5
    inv1 = 1.0 / (N * L1)
    inv2 = 1.0 / (N * L2)

    def bn_scale_shift(y, mask, inv_count, g, b):
        # Single-pass training-mode BatchNorm1d stats over the VALID columns
        # only (mask zeroes the per-sample padding columns).  Channels sit on
        # sublanes, so both reductions are lane reductions.  Stats stay in f32.
        ym = y * mask
        s = jnp.sum(ym, axis=1, keepdims=True)               # (C, 1)
        ss = jnp.sum(ym * y, axis=1, keepdims=True)          # (C, 1)
        mean = s * inv_count
        var = jnp.maximum(ss * inv_count - mean * mean, 0.0)
        scale = g * jax.lax.rsqrt(var + eps)                  # (C, 1)
        shift = b - mean * scale                              # (C, 1)
        return scale, shift

    def conv_taps(a, w_ref):
        # Valid 1-D conv as K accumulate-matmuls on the lane axis:
        #     y[:, c] = sum_k  W_k @ a[:, c + k]
        # The k-shift is an XLU lane rotation (pltpu.roll == jnp.roll), not a
        # per-sample slice / masked store.  Roll wrap-around only ever lands in
        # the per-sample padding columns, which the BN masks exclude.
        acc = jnp.dot(w_ref[0], a, preferred_element_type=jnp.float32)
        for k in range(1, K):
            a_k = pltpu.roll(a, shift=NL - k, axis=1)         # a_k[:, c] = a[:, (c+k) % NL]
            acc = acc + jnp.dot(w_ref[k], a_k, preferred_element_type=jnp.float32)
        return acc

    def kernel(x_ref, w1_ref, w2_ref, wd_ref, gb_ref, o_ref):
        x = x_ref[...]                   # (Cin, N*L) lane-dense, channels on sublanes
        wd = wd_ref[...]                 # (Cout, Cout) 1x1 downsample weight
        gb = gb_ref[...]                 # (Cout, 6) packed BN gamma/beta
        g1, b1 = gb[:, 0:1], gb[:, 1:2]
        g2, b2 = gb[:, 2:3], gb[:, 3:4]
        gd, bd = gb[:, 4:5], gb[:, 5:6]

        # Position of each column inside its sample (each sample owns L
        # contiguous lanes); only the first L1 / L2 positions are valid after
        # conv1 / conv2.  Built in-kernel from a 2-D iota — no captured consts.
        pos = jax.lax.broadcasted_iota(jnp.int32, (1, NL), 1) % L
        mask1 = (pos < L1).astype(jnp.float32)                # (1, N*L)
        mask2 = (pos < L2).astype(jnp.float32)                # (1, N*L)

        # ---- conv1 -> bn1 -> relu ------------------------------------------
        y1 = conv_taps(x, w1_ref)                             # (Cout, N*L)
        s1, t1 = bn_scale_shift(y1, mask1, inv1, g1, b1)
        y1 = jnp.maximum(y1 * s1 + t1, 0.0)
        # conv2 only ever reads valid y1 columns for its own valid outputs, so
        # the (garbage) padding columns never leak into the result.

        # ---- conv2 -> bn2 folded into the 1x1 downsample conv ----------------
        #   Wd @ bn2(y2) = Wd @ (s2 * y2 + t2)   (single matmul; the t2 add is
        #   one VPU broadcast-add — no width-1 MXU launch for the shift term)
        y2 = conv_taps(y1, w2_ref)                            # (Cout, N*L)
        s2, t2 = bn_scale_shift(y2, mask2, inv2, g2, b2)
        z = jnp.dot(wd, y2 * s2 + t2, preferred_element_type=jnp.float32)

        # ---- downsample BN -> final relu -> ONE lane-dense store -------------
        sd, td = bn_scale_shift(z, mask2, inv2, gd, bd)
        o_ref[...] = jnp.maximum(z * sd + td, 0.0).astype(o_ref.dtype)

    return kernel, L2


def pack_params(params):
    """One-time repack of PyTorch-layout parameters into kernel layout:
    per-tap weight stacks (K, Cout, Cin)/(K, Cout, Cout), the 1x1 weight as a
    dense (Cout, Cout) matrix, and all six BN gamma/beta vectors in a single
    (Cout, 6) tile (one padded VMEM tile / DMA instead of six)."""
    w1 = params["w1"]                       # (Cout, Cin, K)
    w2 = params["w2"]                       # (Cout, Cout, K)
    wd = params["wd"]                       # (Cout, Cout, 1)
    _, _, K = w1.shape
    gb = jnp.stack([params["g1"], params["b1"], params["g2"],
                    params["b2"], params["gd"], params["bd"]], axis=1)   # (Cout, 6)
    return {
        "w1": jnp.transpose(w1, (2, 0, 1)).astype(jnp.float32),   # (K, Cout, Cin)
        "w2": jnp.transpose(w2, (2, 0, 1)).astype(jnp.float32),   # (K, Cout, Cout)
        "wd": wd[:, :, 0].astype(jnp.float32),                    # (Cout, Cout)
        "gb": gb.astype(jnp.float32),
        "kernel_size": K,
    }


def basic_block_forward(x_ncl, packed):
    """x_ncl: (N, Cin, L) float32 in PyTorch Conv1d NCL layout.
    Returns (N, Cout, L - 2*(K-1)) float32, matching BasicBlock.forward."""
    N, Cin, L = x_ncl.shape
    K = packed["kernel_size"]
    Cout = packed["wd"].shape[0]
    kernel, L2 = _make_kernel(N, Cin, Cout, K, L)

    # Layout plumbing (not compute) in the wrapper: channels-first lane-dense slab.
    x2d = jnp.transpose(x_ncl, (1, 0, 2)).reshape(Cin, N * L)

    vmem = pl.BlockSpec(memory_space=pltpu.MemorySpace.VMEM)
    out2d = pl.pallas_call(
        kernel,
        out_shape=jax.ShapeDtypeStruct((Cout, N * L), jnp.float32),
        in_specs=[vmem] * 5,
        out_specs=vmem,
        compiler_params=pltpu.CompilerParams(
            vmem_limit_bytes=32 * 1024 * 1024,   # explicit budget (v7x has only 64 MiB physical)
        ),
    )(x2d, packed["w1"], packed["w2"], packed["wd"], packed["gb"])

    # Lane-dense (Cout, N*L) slab -> NCL, dropping per-sample padding columns.
    return jnp.transpose(out2d.reshape(Cout, N, L)[:, :, :L2], (1, 0, 2))


def init_params(key, in_size, out_size, kernel_size):
    ks = jax.random.split(key, 9)
    s1 = (1.0 / (in_size * kernel_size)) ** 0.5
    s2 = (1.0 / (out_size * kernel_size)) ** 0.5
    sd = (1.0 / out_size) ** 0.5
    return {
        "w1": jax.random.normal(ks[0], (out_size, in_size, kernel_size), jnp.float32) * s1,
        "w2": jax.random.normal(ks[1], (out_size, out_size, kernel_size), jnp.float32) * s2,
        "wd": jax.random.normal(ks[2], (out_size, out_size, 1), jnp.float32) * sd,
        # Slightly perturbed affine BN params so the scale/shift path is exercised.
        "g1": 1.0 + 0.1 * jax.random.normal(ks[3], (out_size,), jnp.float32),
        "b1": 0.1 * jax.random.normal(ks[4], (out_size,), jnp.float32),
        "g2": 1.0 + 0.1 * jax.random.normal(ks[5], (out_size,), jnp.float32),
        "b2": 0.1 * jax.random.normal(ks[6], (out_size,), jnp.float32),
        "gd": 1.0 + 0.1 * jax.random.normal(ks[7], (out_size,), jnp.float32),
        "bd": 0.1 * jax.random.normal(ks[8], (out_size,), jnp.float32),
    }


def reference_forward(x, params):
    """Plain-JAX mirror of the PyTorch BasicBlock forward (training-mode BN)."""
    eps = 1e-5

    def conv1d(inp, w):
        return jax.lax.conv_general_dilated(
            inp, w, window_strides=(1,), padding="VALID",
            dimension_numbers=("NCH", "OIH", "NCH"))

    def bn(inp, g, b):
        mean = jnp.mean(inp, axis=(0, 2), keepdims=True)
        var = jnp.mean((inp - mean) ** 2, axis=(0, 2), keepdims=True)
        return (inp - mean) * jax.lax.rsqrt(var + eps) * g[None, :, None] + b[None, :, None]

    out = conv1d(x, params["w1"])
    out = bn(out, params["g1"], params["b1"])
    out = jnp.maximum(out, 0.0)
    out = conv1d(out, params["w2"])
    out = bn(out, params["g2"], params["b2"])
    out = conv1d(out, params["wd"])
    out = bn(out, params["gd"], params["bd"])
    out = jnp.maximum(out, 0.0)
    return out


if __name__ == "__main__":
    in_size, out_size, kernel_size = 4, 8, 3
    batch, length = 2, 16

    key = jax.random.PRNGKey(0)
    kx, kp = jax.random.split(key)
    x = jax.random.normal(kx, (batch, in_size, length), jnp.float32)   # NCL
    params = init_params(kp, in_size, out_size, kernel_size)
    packed = pack_params(params)                                       # one-time repack

    out = basic_block_forward(x, packed)
    jax.block_until_ready(out)
    assert out.shape == (batch, out_size, length - 2 * (kernel_size - 1))

    # Sanity check against a plain-JAX reference (loose tol: only structural
    # bugs produce O(1) errors; MXU precision noise stays far below this).
    ref = reference_forward(x, params)
    max_err = float(jnp.max(jnp.abs(out - ref)))
    assert max_err < 5e-2, f"mismatch vs reference: max abs err = {max_err}"

    print("KERNEL_OK")
</pallas_src>

<mosaic_0001>
module attributes {stable_mosaic.version = 11 : i64} {
  func.func @kernel(%arg0: memref<4x32xf32, #tpu.memory_space<vmem>>, %arg1: memref<3x8x4xf32, #tpu.memory_space<vmem>>, %arg2: memref<3x8x8xf32, #tpu.memory_space<vmem>>, %arg3: memref<8x8xf32, #tpu.memory_space<vmem>>, %arg4: memref<8x6xf32, #tpu.memory_space<vmem>>, %arg5: memref<8x32xf32, #tpu.memory_space<vmem>>) attributes {dimension_semantics = [], scalar_prefetch = 0 : i64, scratch_operands = 0 : i64, tpu.core_type = #tpu.core_type<tc>} {
    %c0 = arith.constant 0 : index
    %c0_0 = arith.constant 0 : index
    %0 = vector.load %arg0[%c0, %c0_0] : memref<4x32xf32, #tpu.memory_space<vmem>>, vector<4x32xf32>
    %c0_1 = arith.constant 0 : index
    %c0_2 = arith.constant 0 : index
    %1 = vector.load %arg3[%c0_1, %c0_2] : memref<8x8xf32, #tpu.memory_space<vmem>>, vector<8x8xf32>
    %c0_3 = arith.constant 0 : index
    %c0_4 = arith.constant 0 : index
    %2 = vector.load %arg4[%c0_3, %c0_4] : memref<8x6xf32, #tpu.memory_space<vmem>>, vector<8x6xf32>
    %3 = vector.extract_strided_slice %2 {offsets = [0, 0], sizes = [8, 1], strides = [1, 1]} : vector<8x6xf32> to vector<8x1xf32>
    %4 = vector.extract_strided_slice %2 {offsets = [0, 1], sizes = [8, 1], strides = [1, 1]} : vector<8x6xf32> to vector<8x1xf32>
    %5 = vector.extract_strided_slice %2 {offsets = [0, 2], sizes = [8, 1], strides = [1, 1]} : vector<8x6xf32> to vector<8x1xf32>
    %6 = vector.extract_strided_slice %2 {offsets = [0, 3], sizes = [8, 1], strides = [1, 1]} : vector<8x6xf32> to vector<8x1xf32>
    %7 = vector.extract_strided_slice %2 {offsets = [0, 4], sizes = [8, 1], strides = [1, 1]} : vector<8x6xf32> to vector<8x1xf32>
    %8 = vector.extract_strided_slice %2 {offsets = [0, 5], sizes = [8, 1], strides = [1, 1]} : vector<8x6xf32> to vector<8x1xf32>
    %9 = tpu.iota {dimensions = array<i32: 1>} : vector<1x32xi32>
    %c16_i32 = arith.constant 16 : i32
    %c0_i32 = arith.constant 0 : i32
    %10 = arith.cmpi eq, %c16_i32, %c0_i32 : i32
    %c1_i32 = arith.constant 1 : i32
    %11 = arith.select %10, %c1_i32, %c16_i32 : i32
    %12 = vector.broadcast %11 : i32 to vector<1x32xi32>
    %13 = arith.remsi %9, %12 : vector<1x32xi32>
    %c0_i32_5 = arith.constant 0 : i32
    %14 = vector.broadcast %c0_i32_5 : i32 to vector<1x32xi32>
    %15 = arith.cmpi ne, %13, %14 : vector<1x32xi32>
    %c0_i32_6 = arith.constant 0 : i32
    %16 = vector.broadcast %c0_i32_6 : i32 to vector<1x32xi32>
    %17 = arith.cmpi slt, %13, %16 : vector<1x32xi32>
    %c0_i32_7 = arith.constant 0 : i32
    %18 = arith.cmpi slt, %11, %c0_i32_7 : i32
    %19 = vector.broadcast %18 : i1 to vector<1x32xi1>
    %20 = vector.broadcast %19 : vector<1x32xi1> to vector<1x32xi1>
    %21 = arith.xori %17, %20 : vector<1x32xi1>
    %22 = arith.andi %21, %15 : vector<1x32xi1>
    %23 = vector.broadcast %11 : i32 to vector<1x32xi32>
    %24 = arith.addi %13, %23 : vector<1x32xi32>
    %25 = arith.select %22, %24, %13 : vector<1x32xi1>, vector<1x32xi32>
    %c14_i32 = arith.constant 14 : i32
    %26 = vector.broadcast %c14_i32 : i32 to vector<1x32xi32>
    %27 = arith.cmpi slt, %25, %26 : vector<1x32xi32>
    %28 = arith.extui %27 : vector<1x32xi1> to vector<1x32xi32>
    %29 = arith.sitofp %28 : vector<1x32xi32> to vector<1x32xf32>
    %c12_i32 = arith.constant 12 : i32
    %30 = vector.broadcast %c12_i32 : i32 to vector<1x32xi32>
    %31 = arith.cmpi slt, %25, %30 : vector<1x32xi32>
    %32 = arith.extui %31 : vector<1x32xi1> to vector<1x32xi32>
    %33 = arith.sitofp %32 : vector<1x32xi32> to vector<1x32xf32>
    %c0_8 = arith.constant 0 : index
    %c0_9 = arith.constant 0 : index
    %c0_10 = arith.constant 0 : index
    %34 = vector.load %arg1[%c0_8, %c0_9, %c0_10] : memref<3x8x4xf32, #tpu.memory_space<vmem>>, vector<1x8x4xf32>
    %35 = vector.shape_cast %34 : vector<1x8x4xf32> to vector<8x4xf32>
    %cst = arith.constant dense<0.000000e+00> : vector<8x32xf32>
    %36 = tpu.matmul %35, %0, %cst {dimension_numbers = #tpu.dot_dimension_numbers<[1], [0], [0], [1], [0, 0, 1, 1], [], []>} : vector<8x4xf32>, vector<4x32xf32>, vector<8x32xf32> -> vector<8x32xf32>
    %c31_i32 = arith.constant 31 : i32
    %37 = tpu.dynamic_rotate %0 by %c31_i32 dim 1 : vector<4x32xf32>, i32 -> vector<4x32xf32>
    %c1 = arith.constant 1 : index
    %c0_11 = arith.constant 0 : index
    %c0_12 = arith.constant 0 : index
    %38 = vector.load %arg1[%c1, %c0_11, %c0_12] : memref<3x8x4xf32, #tpu.memory_space<vmem>>, vector<1x8x4xf32>
    %39 = vector.shape_cast %38 : vector<1x8x4xf32> to vector<8x4xf32>
    %cst_13 = arith.constant dense<0.000000e+00> : vector<8x32xf32>
    %40 = tpu.matmul %39, %37, %cst_13 {dimension_numbers = #tpu.dot_dimension_numbers<[1], [0], [0], [1], [0, 0, 1, 1], [], []>} : vector<8x4xf32>, vector<4x32xf32>, vector<8x32xf32> -> vector<8x32xf32>
    %41 = arith.addf %36, %40 : vector<8x32xf32>
    %c30_i32 = arith.constant 30 : i32
    %42 = tpu.dynamic_rotate %0 by %c30_i32 dim 1 : vector<4x32xf32>, i32 -> vector<4x32xf32>
    %c2 = arith.constant 2 : index
    %c0_14 = arith.constant 0 : index
    %c0_15 = arith.constant 0 : index
    %43 = vector.load %arg1[%c2, %c0_14, %c0_15] : memref<3x8x4xf32, #tpu.memory_space<vmem>>, vector<1x8x4xf32>
    %44 = vector.shape_cast %43 : vector<1x8x4xf32> to vector<8x4xf32>
    %cst_16 = arith.constant dense<0.000000e+00> : vector<8x32xf32>
    %45 = tpu.matmul %44, %42, %cst_16 {dimension_numbers = #tpu.dot_dimension_numbers<[1], [0], [0], [1], [0, 0, 1, 1], [], []>} : vector<8x4xf32>, vector<4x32xf32>, vector<8x32xf32> -> vector<8x32xf32>
    %46 = arith.addf %41, %45 : vector<8x32xf32>
    %47 = vector.broadcast %29 : vector<1x32xf32> to vector<8x32xf32>
    %48 = arith.mulf %46, %47 : vector<8x32xf32>
    %cst_17 = arith.constant dense<0.000000e+00> : vector<8xf32>
    %49 = vector.multi_reduction <add>, %48, %cst_17 [1] : vector<8x32xf32> to vector<8xf32>
    %50 = vector.shape_cast %49 : vector<8xf32> to vector<8x1xf32>
    %51 = arith.mulf %48, %46 : vector<8x32xf32>
    %cst_18 = arith.constant dense<0.000000e+00> : vector<8xf32>
    %52 = vector.multi_reduction <add>, %51, %cst_18 [1] : vector<8x32xf32> to vector<8xf32>
    %53 = vector.shape_cast %52 : vector<8xf32> to vector<8x1xf32>
    %cst_19 = arith.constant 0.0357142873 : f32
    %54 = vector.broadcast %cst_19 : f32 to vector<8x1xf32>
    %55 = arith.mulf %50, %54 : vector<8x1xf32>
    %cst_20 = arith.constant 0.0357142873 : f32
    %56 = vector.broadcast %cst_20 : f32 to vector<8x1xf32>
    %57 = arith.mulf %53, %56 : vector<8x1xf32>
    %58 = arith.mulf %55, %55 : vector<8x1xf32>
    %59 = arith.subf %57, %58 : vector<8x1xf32>
    %cst_21 = arith.constant 0.000000e+00 : f32
    %60 = vector.broadcast %cst_21 : f32 to vector<8x1xf32>
    %61 = arith.maximumf %59, %60 : vector<8x1xf32>
    %cst_22 = arith.constant 9.99999974E-6 : f32
    %62 = vector.broadcast %cst_22 : f32 to vector<8x1xf32>
    %63 = arith.addf %61, %62 : vector<8x1xf32>
    %64 = math.rsqrt %63 : vector<8x1xf32>
    %65 = arith.mulf %3, %64 : vector<8x1xf32>
    %66 = arith.mulf %55, %65 : vector<8x1xf32>
    %67 = arith.subf %4, %66 : vector<8x1xf32>
    %68 = vector.broadcast %65 : vector<8x1xf32> to vector<8x32xf32>
    %69 = arith.mulf %46, %68 : vector<8x32xf32>
    %70 = vector.broadcast %67 : vector<8x1xf32> to vector<8x32xf32>
    %71 = arith.addf %69, %70 : vector<8x32xf32>
    %cst_23 = arith.constant 0.000000e+00 : f32
    %72 = vector.broadcast %cst_23 : f32 to vector<8x32xf32>
    %73 = arith.maximumf %71, %72 : vector<8x32xf32>
    %c0_24 = arith.constant 0 : index
    %c0_25 = arith.constant 0 : index
    %c0_26 = arith.constant 0 : index
    %74 = vector.load %arg2[%c0_24, %c0_25, %c0_26] : memref<3x8x8xf32, #tpu.memory_space<vmem>>, vector<1x8x8xf32>
    %75 = vector.shape_cast %74 : vector<1x8x8xf32> to vector<8x8xf32>
    %cst_27 = arith.constant dense<0.000000e+00> : vector<8x32xf32>
    %76 = tpu.matmul %75, %73, %cst_27 {dimension_numbers = #tpu.dot_dimension_numbers<[1], [0], [0], [1], [0, 0, 1, 1], [], []>} : vector<8x8xf32>, vector<8x32xf32>, vector<8x32xf32> -> vector<8x32xf32>
    %c31_i32_28 = arith.constant 31 : i32
    %77 = tpu.dynamic_rotate %73 by %c31_i32_28 dim 1 : vector<8x32xf32>, i32 -> vector<8x32xf32>
    %c1_29 = arith.constant 1 : index
    %c0_30 = arith.constant 0 : index
    %c0_31 = arith.constant 0 : index
    %78 = vector.load %arg2[%c1_29, %c0_30, %c0_31] : memref<3x8x8xf32, #tpu.memory_space<vmem>>, vector<1x8x8xf32>
    %79 = vector.shape_cast %78 : vector<1x8x8xf32> to vector<8x8xf32>
    %cst_32 = arith.constant dense<0.000000e+00> : vector<8x32xf32>
    %80 = tpu.matmul %79, %77, %cst_32 {dimension_numbers = #tpu.dot_dimension_numbers<[1], [0], [0], [1], [0, 0, 1, 1], [], []>} : vector<8x8xf32>, vector<8x32xf32>, vector<8x32xf32> -> vector<8x32xf32>
    %81 = arith.addf %76, %80 : vector<8x32xf32>
    %c30_i32_33 = arith.constant 30 : i32
    %82 = tpu.dynamic_rotate %73 by %c30_i32_33 dim 1 : vector<8x32xf32>, i32 -> vector<8x32xf32>
    %c2_34 = arith.constant 2 : index
    %c0_35 = arith.constant 0 : index
    %c0_36 = arith.constant 0 : index
    %83 = vector.load %arg2[%c2_34, %c0_35, %c0_36] : memref<3x8x8xf32, #tpu.memory_space<vmem>>, vector<1x8x8xf32>
    %84 = vector.shape_cast %83 : vector<1x8x8xf32> to vector<8x8xf32>
    %cst_37 = arith.constant dense<0.000000e+00> : vector<8x32xf32>
    %85 = tpu.matmul %84, %82, %cst_37 {dimension_numbers = #tpu.dot_dimension_numbers<[1], [0], [0], [1], [0, 0, 1, 1], [], []>} : vector<8x8xf32>, vector<8x32xf32>, vector<8x32xf32> -> vector<8x32xf32>
    %86 = arith.addf %81, %85 : vector<8x32xf32>
    %87 = vector.broadcast %33 : vector<1x32xf32> to vector<8x32xf32>
    %88 = arith.mulf %86, %87 : vector<8x32xf32>
    %cst_38 = arith.constant dense<0.000000e+00> : vector<8xf32>
    %89 = vector.multi_reduction <add>, %88, %cst_38 [1] : vector<8x32xf32> to vector<8xf32>
    %90 = vector.shape_cast %89 : vector<8xf32> to vector<8x1xf32>
    %91 = arith.mulf %88, %86 : vector<8x32xf32>
    %cst_39 = arith.constant dense<0.000000e+00> : vector<8xf32>
    %92 = vector.multi_reduction <add>, %91, %cst_39 [1] : vector<8x32xf32> to vector<8xf32>
    %93 = vector.shape_cast %92 : vector<8xf32> to vector<8x1xf32>
    %cst_40 = arith.constant 0.0416666679 : f32
    %94 = vector.broadcast %cst_40 : f32 to vector<8x1xf32>
    %95 = arith.mulf %90, %94 : vector<8x1xf32>
    %cst_41 = arith.constant 0.0416666679 : f32
    %96 = vector.broadcast %cst_41 : f32 to vector<8x1xf32>
    %97 = arith.mulf %93, %96 : vector<8x1xf32>
    %98 = arith.mulf %95, %95 : vector<8x1xf32>
    %99 = arith.subf %97, %98 : vector<8x1xf32>
    %cst_42 = arith.constant 0.000000e+00 : f32
    %100 = vector.broadcast %cst_42 : f32 to vector<8x1xf32>
    %101 = arith.maximumf %99, %100 : vector<8x1xf32>
    %cst_43 = arith.constant 9.99999974E-6 : f32
    %102 = vector.broadcast %cst_43 : f32 to vector<8x1xf32>
    %103 = arith.addf %101, %102 : vector<8x1xf32>
    %104 = math.rsqrt %103 : vector<8x1xf32>
    %105 = arith.mulf %5, %104 : vector<8x1xf32>
    %106 = arith.mulf %95, %105 : vector<8x1xf32>
    %107 = arith.subf %6, %106 : vector<8x1xf32>
    %108 = vector.broadcast %105 : vector<8x1xf32> to vector<8x32xf32>
    %109 = arith.mulf %86, %108 : vector<8x32xf32>
    %110 = vector.broadcast %107 : vector<8x1xf32> to vector<8x32xf32>
    %111 = arith.addf %109, %110 : vector<8x32xf32>
    %cst_44 = arith.constant dense<0.000000e+00> : vector<8x32xf32>
    %112 = tpu.matmul %1, %111, %cst_44 {dimension_numbers = #tpu.dot_dimension_numbers<[1], [0], [0], [1], [0, 0, 1, 1], [], []>} : vector<8x8xf32>, vector<8x32xf32>, vector<8x32xf32> -> vector<8x32xf32>
    %113 = vector.broadcast %33 : vector<1x32xf32> to vector<8x32xf32>
    %114 = arith.mulf %112, %113 : vector<8x32xf32>
    %cst_45 = arith.constant dense<0.000000e+00> : vector<8xf32>
    %115 = vector.multi_reduction <add>, %114, %cst_45 [1] : vector<8x32xf32> to vector<8xf32>
    %116 = vector.shape_cast %115 : vector<8xf32> to vector<8x1xf32>
    %117 = arith.mulf %114, %112 : vector<8x32xf32>
    %cst_46 = arith.constant dense<0.000000e+00> : vector<8xf32>
    %118 = vector.multi_reduction <add>, %117, %cst_46 [1] : vector<8x32xf32> to vector<8xf32>
    %119 = vector.shape_cast %118 : vector<8xf32> to vector<8x1xf32>
    %cst_47 = arith.constant 0.0416666679 : f32
    %120 = vector.broadcast %cst_47 : f32 to vector<8x1xf32>
    %121 = arith.mulf %116, %120 : vector<8x1xf32>
    %cst_48 = arith.constant 0.0416666679 : f32
    %122 = vector.broadcast %cst_48 : f32 to vector<8x1xf32>
    %123 = arith.mulf %119, %122 : vector<8x1xf32>
    %124 = arith.mulf %121, %121 : vector<8x1xf32>
    %125 = arith.subf %123, %124 : vector<8x1xf32>
    %cst_49 = arith.constant 0.000000e+00 : f32
    %126 = vector.broadcast %cst_49 : f32 to vector<8x1xf32>
    %127 = arith.maximumf %125, %126 : vector<8x1xf32>
    %cst_50 = arith.constant 9.99999974E-6 : f32
    %128 = vector.broadcast %cst_50 : f32 to vector<8x1xf32>
    %129 = arith.addf %127, %128 : vector<8x1xf32>
    %130 = math.rsqrt %129 : vector<8x1xf32>
    %131 = arith.mulf %7, %130 : vector<8x1xf32>
    %132 = arith.mulf %121, %131 : vector<8x1xf32>
    %133 = arith.subf %8, %132 : vector<8x1xf32>
    %134 = vector.broadcast %131 : vector<8x1xf32> to vector<8x32xf32>
    %135 = arith.mulf %112, %134 : vector<8x32xf32>
    %136 = vector.broadcast %133 : vector<8x1xf32> to vector<8x32xf32>
    %137 = arith.addf %135, %136 : vector<8x32xf32>
    %cst_51 = arith.constant 0.000000e+00 : f32
    %138 = vector.broadcast %cst_51 : f32 to vector<8x32xf32>
    %139 = arith.maximumf %137, %138 : vector<8x32xf32>
    %c0_52 = arith.constant 0 : index
    %c0_53 = arith.constant 0 : index
    %140 = vector.load %arg5[%c0_52, %c0_53] : memref<8x32xf32, #tpu.memory_space<vmem>>, vector<8x32xf32>
    tpu.vector_store %arg5[%c0_52, %c0_53], %139 {strides = array<i32>} : memref<8x32xf32, #tpu.memory_space<vmem>>, vector<8x32xf32>,
    return
  }
}

</mosaic_0001>

<llo_original>
// kernel: tpu_custom_call.1
$region0: #{tpu_custom_call.1}
  #allocation0 [shape = 'u32[]', space=smem, size = 0x4, offset = 0x4, fixed_abs, tag = 'smem constant byte address 0x4 - core index']
  #allocation1 [shape = 'u32[144,128]{1,0:T(1,128)}', space=vmem, size = 0x12000, scoped, tag = 'internal scratch']
  %s0 = inlined_call_operand.hbm [shape: f32[4,32], index: 0, kind: input, shape index: {}]
  %s1 = inlined_call_operand.vmem [shape: f32[3,8,4], index: 1, kind: input, shape index: {}]
  %s2 = inlined_call_operand.vmem [shape: f32[3,8,8], index: 2, kind: input, shape index: {}]
  %s3 = inlined_call_operand.vmem [shape: f32[8,8], index: 3, kind: input, shape index: {}]
  %s4 = inlined_call_operand.vmem [shape: f32[8,6], index: 4, kind: input, shape index: {}]
  %s5 = inlined_call_operand.hbm [shape: f32[8,32], index: 5, kind: output, shape index: {}]
  %s6 = sld [smem:[#allocation0]]
  $region34: #{tpu_custom_call.1} parent=0
    _
  %s8 = ssub.s32 1, %s6
  %s9 = scalar_select 0, %s8, %s6
  $region1: #{tpu_custom_call.1} parent=0
    #allocation2 [shape = 'u8[2048]{0}', space=vmem, size = 0x800, scoped, tag = 'input window, operand 0, single buffered']
    #allocation3 [shape = 's32[1]{0}', space=sflag, size = 0x4, scoped, tag = 'scoped memory for tpu_custom_call.1']
    #allocation4 [shape = 's32[1]{0}', space=sflag, size = 0x4, scoped, tag = 'scoped memory for tpu_custom_call.1']
    #allocation5 [shape = 'u8[4096]{0}', space=vmem, size = 0x1000, scoped, tag = 'output window, operand 0, single buffered']
    %10 = vsyncpa [#allocation3], 0
    %11 = vsyncpa [#allocation4], 0
    // Predicated region
    $region2: #{tpu_custom_call.1} parent=1 // pred_check
      _
    $region3: #{tpu_custom_call.1} parent=1 // pred_check_branch
      %13 = sbr.rel (0) target = $region5
    $region4: #{tpu_custom_call.1} parent=1 // pred_region
      %s15 = ssub.s32 64, 64
      %16 = vsyncadd [#allocation3], %s15
      %s18 = sshll.u32 [#allocation2], 4
      %s19 = int_to_ptr.vmem [resolvable:$true] %s18
      %21 = dma.hbm_to_vmem [thread:$0]  %s0, 64, %s19, [#allocation3]
    $region5: #{tpu_custom_call.1} parent=1 // pred_fallthru
      _
    // Predicated region
    $region6: #{tpu_custom_call.1} parent=1 // pred_check
      _
    $region7: #{tpu_custom_call.1} parent=1 // pred_check_branch
      %23 = sbr.rel (0) target = $region9
    $region8: #{tpu_custom_call.1} parent=1 // pred_region
      _
    $region9: #{tpu_custom_call.1} parent=1 // pred_fallthru
      _
    // Predicated region
    $region10: #{tpu_custom_call.1} parent=1 // pred_check
      _
    $region11: #{tpu_custom_call.1} parent=1 // pred_check_branch
      %25 = sbr.rel (0) target = $region13
    $region12: #{tpu_custom_call.1} parent=1 // pred_region
      _
    $region13: #{tpu_custom_call.1} parent=1 // pred_fallthru
      _
    // Predicated region
    $region14: #{tpu_custom_call.1} parent=1 // pred_check
      _
    $region15: #{tpu_custom_call.1} parent=1 // pred_check_branch
      %27 = sbr.rel (0) target = $region17
    $region16: #{tpu_custom_call.1} parent=1 // pred_region
      _
    $region17: #{tpu_custom_call.1} parent=1 // pred_fallthru
      _
    // Predicated region
    $region18: #{tpu_custom_call.1} parent=1 // pred_check
      _
    $region19: #{tpu_custom_call.1} parent=1 // pred_check_branch
      %29 = sbr.rel (0) target = $region21
    $region20: #{tpu_custom_call.1} parent=1 // pred_region
      _
    $region21: #{tpu_custom_call.1} parent=1 // pred_fallthru
      _
    // Predicated region
    $region22: #{tpu_custom_call.1} parent=1 // pred_check
      _
    $region23: #{tpu_custom_call.1} parent=1 // pred_check_branch
      %31 = sbr.rel (0) target = $region25
    $region24: #{tpu_custom_call.1} parent=1 // pred_region
      %32 = dma.done [#allocation3], 64
    $region25: #{tpu_custom_call.1} parent=1 // pred_fallthru
      _
    %v33 = vld [vmem:[#allocation2] sm:$0xf]
    %v34 = vld [vmem:[%s3] sm:$0xff]
    %v35 = vld [vmem:[%s4] sm:$0xff]
    %v36 = vlaneseq
    %v37 = vand.u32 %v36, 127
    %vm38 = vcmp.lt.s32.totalorder %v37, 0
    %v39 = vsub.s32 0, %v37
    %v40 = vsel %vm38, %v39, %v37
    %v41 = vshrl.u32 %v40, 4
    %v42 = vand.u32 %v40, 15
    %v43 = vsub.s32 0, %v42
    %v44 = vsel %vm38, %v43, %v42
    %vm45 = vcmp.ne.s32.totalorder %v44, 0
    %vm46 = vcmp.lt.s32.totalorder %v44, 0
    %vm47 = vmand %vm46, %vm45
    %v48 = vadd.s32 %v44, 16
    %v49 = vsel %vm47, %v48, %v44
    %vm50 = vcmp.lt.s32.totalorder %v49, 14
    %v51 = vsel %vm50, 1, 0
    %v52 = vcvt.s32.f32 %v51
    %vm53 = vcmp.lt.s32.totalorder %v49, 12
    %v54 = vsel %vm53, 1, 0
    %v55 = vcvt.s32.f32 %v54
    %v56 = vld [vmem:[%s1] sm:$0xff]
    %vm57 = vcmask 1047808
    %58 = vrot.lane.b32.xlu0 %v33, 32
    %v59 = vpop.permute.xlu0 %58
    %v60 = vsel %vm57, %v59, %v33
    %61 = vrot.lane.b32.xlu0 %v60, 32
    %v62 = vpop.permute.xlu0 %61
    %v63 = vsel %vm57, %v62, %v33
    %s64 = scalar_lea.vmem %s1, 8
    %v65 = vld [vmem:[%s64] sm:$0xff]
    %67 = vrot.lane.b32.xlu0 %v63, 127
    %v68 = vpop.permute.xlu0 %67
    %vm69 = vcmask 31744
    %v71 = vsel %vm69, %v65, 0
    %vm73 = vcmask 1043456
    %v74 = vsel %vm73, %v68, 0
    %76 = vmatprep.subr.mxu0 0.0
    %77 = vmatpush1.msra.mxu0 %v74
    %78 = vmatprep.subr.mxu0 0.0
    %79 = vmatpush1.msra.mxu0 0.0
    %80 = vmatprep.subr.mxu0 0.0
    %81 = vmatpush1.msra.mxu0 0.0
    %82 = vmatprep.subr.mxu0 0.0
    %83 = vmatpush1.msra.mxu0 0.0
    %84 = vmatprep.subr.mxu0 0.0
    %85 = vmatpush1.msra.mxu0 0.0
    %86 = vmatprep.subr.mxu0 0.0
    %87 = vmatpush1.msra.mxu0 0.0
    %88 = vmatprep.subr.mxu0 0.0
    %89 = vmatpush1.msra.mxu0 0.0
    %90 = vmatprep.subr.mxu0 0.0
    %91 = vmatpush1.msra.mxu0 0.0
    %92 = vmatprep.subr.mxu0 0.0
    %93 = vmatpush1.msra.mxu0 0.0
    %94 = vmatprep.subr.mxu0 0.0
    %95 = vmatpush1.msra.mxu0 0.0
    %96 = vmatprep.subr.mxu0 0.0
    %97 = vmatpush1.msra.mxu0 0.0
    %98 = vmatprep.subr.mxu0 0.0
    %99 = vmatpush1.msra.mxu0 0.0
    %100 = vmatprep.subr.mxu0 0.0
    %101 = vmatpush1.msra.mxu0 0.0
    %102 = vmatprep.subr.mxu0 0.0
    %103 = vmatpush1.msra.mxu0 0.0
    %104 = vmatprep.subr.mxu0 0.0
    %105 = vmatpush1.msra.mxu0 0.0
    %106 = vmatprep.subr.mxu0 0.0
    %107 = vmatpush1.msra.mxu0 0.0
    %108 = vmatprep.subr.mxu0 0.0
    %109 = vmatpush1.msra.mxu0 0.0
    %110 = vmatprep.subr.mxu0 0.0
    %111 = vmatpush1.msra.mxu0 0.0
    %112 = vmatprep.subr.mxu0 0.0
    %113 = vmatpush1.msra.mxu0 0.0
    %114 = vmatprep.subr.mxu0 0.0
    %115 = vmatpush1.msra.mxu0 0.0
    %116 = vmatprep.subr.mxu0 0.0
    %117 = vmatpush1.msra.mxu0 0.0
    %118 = vmatprep.subr.mxu0 0.0
    %119 = vmatpush1.msra.mxu0 0.0
    %120 = vmatprep.subr.mxu0 0.0
    %121 = vmatpush1.msra.mxu0 0.0
    %122 = vmatprep.subr.mxu0 0.0
    %123 = vmatpush1.msra.mxu0 0.0
    %124 = vmatprep.subr.mxu0 0.0
    %125 = vmatpush1.msra.mxu0 0.0
    %126 = vmatprep.subr.mxu0 0.0
    %127 = vmatpush1.msra.mxu0 0.0
    %128 = vmatprep.subr.mxu0 0.0
    %129 = vmatpush1.msra.mxu0 0.0
    %130 = vmatprep.subr.mxu0 0.0
    %131 = vmatpush1.msra.mxu0 0.0
    %132 = vmatprep.subr.mxu0 0.0
    %133 = vmatpush1.msra.mxu0 0.0
    %134 = vmatprep.subr.mxu0 0.0
    %135 = vmatpush1.msra.mxu0 0.0
    %136 = vmatprep.subr.mxu0 0.0
    %137 = vmatpush1.msra.mxu0 0.0
    %138 = vmatprep.subr.mxu0 0.0
    %139 = vmatpush1.msra.mxu0 0.0
    %140 = vmatprep.mubr.f32.mxu0 0.0
    %141 = vmatmul.mubr.f32.gmra.mrb[0].mxu0 %v71
    %v142 = vpop.f32.mrb[0].mxu0
    %v143 = vadd.f32 0.0, %v142
    %v144 = vpop.f32.mrb[0].mxu0
    %145 = vdwg.mxu0
    %v147 = vsel %vm69, %v56, 0
    %v150 = vsel %vm73, %v33, 0
    %152 = vmatprep.subr.mxu0 0.0
    %153 = vmatpush1.msra.mxu0 %v150
    %154 = vmatprep.subr.mxu0 0.0
    %155 = vmatpush1.msra.mxu0 0.0
    %156 = vmatprep.subr.mxu0 0.0
    %157 = vmatpush1.msra.mxu0 0.0
    %158 = vmatprep.subr.mxu0 0.0
    %159 = vmatpush1.msra.mxu0 0.0
    %160 = vmatprep.subr.mxu0 0.0
    %161 = vmatpush1.msra.mxu0 0.0
    %162 = vmatprep.subr.mxu0 0.0
    %163 = vmatpush1.msra.mxu0 0.0
    %164 = vmatprep.subr.mxu0 0.0
    %165 = vmatpush1.msra.mxu0 0.0
    %166 = vmatprep.subr.mxu0 0.0
    %167 = vmatpush1.msra.mxu0 0.0
    %168 = vmatprep.subr.mxu0 0.0
    %169 = vmatpush1.msra.mxu0 0.0
    %170 = vmatprep.subr.mxu0 0.0
    %171 = vmatpush1.msra.mxu0 0.0
    %172 = vmatprep.subr.mxu0 0.0
    %173 = vmatpush1.msra.mxu0 0.0
    %174 = vmatprep.subr.mxu0 0.0
    %175 = vmatpush1.msra.mxu0 0.0
    %176 = vmatprep.subr.mxu0 0.0
    %177 = vmatpush1.msra.mxu0 0.0
    %178 = vmatprep.subr.mxu0 0.0
    %179 = vmatpush1.msra.mxu0 0.0
    %180 = vmatprep.subr.mxu0 0.0
    %181 = vmatpush1.msra.mxu0 0.0
    %182 = vmatprep.subr.mxu0 0.0
    %183 = vmatpush1.msra.mxu0 0.0
    %184 = vmatprep.subr.mxu0 0.0
    %185 = vmatpush1.msra.mxu0 0.0
    %186 = vmatprep.subr.mxu0 0.0
    %187 = vmatpush1.msra.mxu0 0.0
    %188 = vmatprep.subr.mxu0 0.0
    %189 = vmatpush1.msra.mxu0 0.0
    %190 = vmatprep.subr.mxu0 0.0
    %191 = vmatpush1.msra.mxu0 0.0
    %192 = vmatprep.subr.mxu0 0.0
    %193 = vmatpush1.msra.mxu0 0.0
    %194 = vmatprep.subr.mxu0 0.0
    %195 = vmatpush1.msra.mxu0 0.0
    %196 = vmatprep.subr.mxu0 0.0
    %197 = vmatpush1.msra.mxu0 0.0
    %198 = vmatprep.subr.mxu0 0.0
    %199 = vmatpush1.msra.mxu0 0.0
    %200 = vmatprep.subr.mxu0 0.0
    %201 = vmatpush1.msra.mxu0 0.0
    %202 = vmatprep.subr.mxu0 0.0
    %203 = vmatpush1.msra.mxu0 0.0
    %204 = vmatprep.subr.mxu0 0.0
    %205 = vmatpush1.msra.mxu0 0.0
    %206 = vmatprep.subr.mxu0 0.0
    %207 = vmatpush1.msra.mxu0 0.0
    %208 = vmatprep.subr.mxu0 0.0
    %209 = vmatpush1.msra.mxu0 0.0
    %210 = vmatprep.subr.mxu0 0.0
    %211 = vmatpush1.msra.mxu0 0.0
    %212 = vmatprep.subr.mxu0 0.0
    %213 = vmatpush1.msra.mxu0 0.0
    %214 = vmatprep.subr.mxu0 0.0
    %215 = vmatpush1.msra.mxu0 0.0
    %216 = vmatprep.mubr.f32.mxu0 0.0
    %217 = vmatmul.mubr.f32.gmra.mrb[0].mxu0 %v147
    %v218 = vpop.f32.mrb[0].mxu0
    %v219 = vadd.f32 %v143, %v218
    %v220 = vpop.f32.mrb[0].mxu0
    %221 = vdwg.mxu0
    %s222 = scalar_lea.vmem %s1, 16
    %v223 = vld [vmem:[%s222] sm:$0xff]
    %224 = vrot.lane.b32.xlu0 %v63, 126
    %v225 = vpop.permute.xlu0 %224
    %v227 = vsel %vm69, %v223, 0
    %v229 = vsel %vm73, %v225, 0
    %231 = vmatprep.subr.mxu0 0.0
    %232 = vmatpush1.msra.mxu0 %v229
    %233 = vmatprep.subr.mxu0 0.0
    %234 = vmatpush1.msra.mxu0 0.0
    %235 = vmatprep.subr.mxu0 0.0
    %236 = vmatpush1.msra.mxu0 0.0
    %237 = vmatprep.subr.mxu0 0.0
    %238 = vmatpush1.msra.mxu0 0.0
    %239 = vmatprep.subr.mxu0 0.0
    %240 = vmatpush1.msra.mxu0 0.0
    %241 = vmatprep.subr.mxu0 0.0
    %242 = vmatpush1.msra.mxu0 0.0
    %243 = vmatprep.subr.mxu0 0.0
    %244 = vmatpush1.msra.mxu0 0.0
    %245 = vmatprep.subr.mxu0 0.0
    %246 = vmatpush1.msra.mxu0 0.0
    %247 = vmatprep.subr.mxu0 0.0
    %248 = vmatpush1.msra.mxu0 0.0
    %249 = vmatprep.subr.mxu0 0.0
    %250 = vmatpush1.msra.mxu0 0.0
    %251 = vmatprep.subr.mxu0 0.0
    %252 = vmatpush1.msra.mxu0 0.0
    %253 = vmatprep.subr.mxu0 0.0
    %254 = vmatpush1.msra.mxu0 0.0
    %255 = vmatprep.subr.mxu0 0.0
    %256 = vmatpush1.msra.mxu0 0.0
    %257 = vmatprep.subr.mxu0 0.0
    %258 = vmatpush1.msra.mxu0 0.0
    %259 = vmatprep.subr.mxu0 0.0
    %260 = vmatpush1.msra.mxu0 0.0
    %261 = vmatprep.subr.mxu0 0.0
    %262 = vmatpush1.msra.mxu0 0.0
    %263 = vmatprep.subr.mxu0 0.0
    %264 = vmatpush1.msra.mxu0 0.0
    %265 = vmatprep.subr.mxu0 0.0
    %266 = vmatpush1.msra.mxu0 0.0
    %267 = vmatprep.subr.mxu0 0.0
    %268 = vmatpush1.msra.mxu0 0.0
    %269 = vmatprep.subr.mxu0 0.0
    %270 = vmatpush1.msra.mxu0 0.0
    %271 = vmatprep.subr.mxu0 0.0
    %272 = vmatpush1.msra.mxu0 0.0
    %273 = vmatprep.subr.mxu0 0.0
    %274 = vmatpush1.msra.mxu0 0.0
    %275 = vmatprep.subr.mxu0 0.0
    %276 = vmatpush1.msra.mxu0 0.0
    %277 = vmatprep.subr.mxu0 0.0
    %278 = vmatpush1.msra.mxu0 0.0
    %279 = vmatprep.subr.mxu0 0.0
    %280 = vmatpush1.msra.mxu0 0.0
    %281 = vmatprep.subr.mxu0 0.0
    %282 = vmatpush1.msra.mxu0 0.0
    %283 = vmatprep.subr.mxu0 0.0
    %284 = vmatpush1.msra.mxu0 0.0
    %285 = vmatprep.subr.mxu0 0.0
    %286 = vmatpush1.msra.mxu0 0.0
    %287 = vmatprep.subr.mxu0 0.0
    %288 = vmatpush1.msra.mxu0 0.0
    %289 = vmatprep.subr.mxu0 0.0
    %290 = vmatpush1.msra.mxu0 0.0
    %291 = vmatprep.subr.mxu0 0.0
    %292 = vmatpush1.msra.mxu0 0.0
    %293 = vmatprep.subr.mxu0 0.0
    %294 = vmatpush1.msra.mxu0 0.0
    %295 = vmatprep.mubr.f32.mxu0 0.0
    %296 = vmatmul.mubr.f32.gmra.mrb[0].mxu0 %v227
    %v297 = vpop.f32.mrb[0].mxu0
    %v298 = vadd.f32 0.0, %v297
    %v299 = vpop.f32.mrb[0].mxu0
    %300 = vdwg.mxu0
    %v301 = vadd.f32 %v219, %v298
    %v302 = vmul.f32 %v301, %v52
    %vm303 = vcmask 261120
    %v304 = vsel %vm303, %v302, 0.0
    %305 = vadd.xlane.f32.xlu0 %v304
    %v306 = vpop.xlane.xlu0 %305
    %v307 = vmul.f32 %v302, %v301
    %v308 = vsel %vm303, %v307, 0.0
    %309 = vadd.xlane.f32.xlu0 %v308
    %v310 = vpop.xlane.xlu0 %309
    %v311 = vmul.f32 %v306, 0.035714287
    %v312 = vmul.f32 %v310, 0.035714287
    %v313 = vmul.f32 %v311, %v311
    %v314 = vsub.f32 %v312, %v313
    %v315 = vmax.f32 %v314, 0.0
    %v316 = vadd.f32 %v315, 1e-05
    %v317 = vrsqrt.pop %v316
    %v318 = vmul.f32 %v35, %v317
    %v319 = vmul.f32 %v311, %v318
    %321 = vrot.lane.b32.xlu0 %v319, 1
    %v322 = vpop.permute.xlu0 %321
    %v324 = vsub.f32 %v35, %v322
    %326 = vset.pattern.permute.xlu0 0
    %327 = vperm.xlu0 %326, %v318
    %v328 = vpop.permute.xlu0 %327
    %v330 = vmul.f32 %v301, %v328
    %332 = vset.pattern.permute.xlu0 1
    %333 = vperm.xlu0 %332, %v324
    %v334 = vpop.permute.xlu0 %333
    %v336 = vadd.f32 %v330, %v334
    %v337 = vmax.f32 %v336, 0.0
    %v338 = vld [vmem:[%s2] sm:$0xff]
    %339 = vrot.lane.b32.xlu0 %v337, 32
    %v340 = vpop.permute.xlu0 %339
    %v341 = vsel %vm57, %v340, %v337
    %342 = vrot.lane.b32.xlu0 %v341, 32
    %v343 = vpop.permute.xlu0 %342
    %v344 = vsel %vm57, %v343, %v337
    %s345 = scalar_lea.vmem %s2, 8
    %v346 = vld [vmem:[%s345] sm:$0xff]
    %348 = vrot.lane.b32.xlu0 %v344, 127
    %v349 = vpop.permute.xlu0 %348
    %vm351 = vcmask 64512
    %v353 = vsel %vm351, %v346, 0
    %355 = vmatprep.subr.mxu0 0.0
    %356 = vmatpush1.msra.mxu0 %v349
    %357 = vmatprep.subr.mxu0 0.0
    %358 = vmatpush1.msra.mxu0 0.0
    %359 = vmatprep.subr.mxu0 0.0
    %360 = vmatpush1.msra.mxu0 0.0
    %361 = vmatprep.subr.mxu0 0.0
    %362 = vmatpush1.msra.mxu0 0.0
    %363 = vmatprep.subr.mxu0 0.0
    %364 = vmatpush1.msra.mxu0 0.0
    %365 = vmatprep.subr.mxu0 0.0
    %366 = vmatpush1.msra.mxu0 0.0
    %367 = vmatprep.subr.mxu0 0.0
    %368 = vmatpush1.msra.mxu0 0.0
    %369 = vmatprep.subr.mxu0 0.0
    %370 = vmatpush1.msra.mxu0 0.0
    %371 = vmatprep.subr.mxu0 0.0
    %372 = vmatpush1.msra.mxu0 0.0
    %373 = vmatprep.subr.mxu0 0.0
    %374 = vmatpush1.msra.mxu0 0.0
    %375 = vmatprep.subr.mxu0 0.0
    %376 = vmatpush1.msra.mxu0 0.0
    %377 = vmatprep.subr.mxu0 0.0
    %378 = vmatpush1.msra.mxu0 0.0
    %379 = vmatprep.subr.mxu0 0.0
    %380 = vmatpush1.msra.mxu0 0.0
    %381 = vmatprep.subr.mxu0 0.0
    %382 = vmatpush1.msra.mxu0 0.0
    %383 = vmatprep.subr.mxu0 0.0
    %384 = vmatpush1.msra.mxu0 0.0
    %385 = vmatprep.subr.mxu0 0.0
    %386 = vmatpush1.msra.mxu0 0.0
    %387 = vmatprep.subr.mxu0 0.0
    %388 = vmatpush1.msra.mxu0 0.0
    %389 = vmatprep.subr.mxu0 0.0
    %390 = vmatpush1.msra.mxu0 0.0
    %391 = vmatprep.subr.mxu0 0.0
    %392 = vmatpush1.msra.mxu0 0.0
    %393 = vmatprep.subr.mxu0 0.0
    %394 = vmatpush1.msra.mxu0 0.0
    %395 = vmatprep.subr.mxu0 0.0
    %396 = vmatpush1.msra.mxu0 0.0
    %397 = vmatprep.subr.mxu0 0.0
    %398 = vmatpush1.msra.mxu0 0.0
    %399 = vmatprep.subr.mxu0 0.0
    %400 = vmatpush1.msra.mxu0 0.0
    %401 = vmatprep.subr.mxu0 0.0
    %402 = vmatpush1.msra.mxu0 0.0
    %403 = vmatprep.subr.mxu0 0.0
    %404 = vmatpush1.msra.mxu0 0.0
    %405 = vmatprep.subr.mxu0 0.0
    %406 = vmatpush1.msra.mxu0 0.0
    %407 = vmatprep.subr.mxu0 0.0
    %408 = vmatpush1.msra.mxu0 0.0
    %409 = vmatprep.subr.mxu0 0.0
    %410 = vmatpush1.msra.mxu0 0.0
    %411 = vmatprep.subr.mxu0 0.0
    %412 = vmatpush1.msra.mxu0 0.0
    %413 = vmatprep.subr.mxu0 0.0
    %414 = vmatpush1.msra.mxu0 0.0
    %415 = vmatprep.subr.mxu0 0.0
    %416 = vmatpush1.msra.mxu0 0.0
    %417 = vmatprep.subr.mxu0 0.0
    %418 = vmatpush1.msra.mxu0 0.0
    %419 = vmatprep.mubr.f32.mxu0 0.0
    %420 = vmatmul.mubr.f32.gmra.mrb[0].mxu0 %v353
    %v421 = vpop.f32.mrb[0].mxu0
    %v422 = vadd.f32 0.0, %v421
    %v423 = vpop.f32.mrb[0].mxu0
    %424 = vdwg.mxu0
    %v426 = vsel %vm351, %v338, 0
    %428 = vmatprep.subr.mxu0 0.0
    %429 = vmatpush1.msra.mxu0 %v337
    %430 = vmatprep.subr.mxu0 0.0
    %431 = vmatpush1.msra.mxu0 0.0
    %432 = vmatprep.subr.mxu0 0.0
    %433 = vmatpush1.msra.mxu0 0.0
    %434 = vmatprep.subr.mxu0 0.0
    %435 = vmatpush1.msra.mxu0 0.0
    %436 = vmatprep.subr.mxu0 0.0
    %437 = vmatpush1.msra.mxu0 0.0
    %438 = vmatprep.subr.mxu0 0.0
    %439 = vmatpush1.msra.mxu0 0.0
    %440 = vmatprep.subr.mxu0 0.0
    %441 = vmatpush1.msra.mxu0 0.0
    %442 = vmatprep.subr.mxu0 0.0
    %443 = vmatpush1.msra.mxu0 0.0
    %444 = vmatprep.subr.mxu0 0.0
    %445 = vmatpush1.msra.mxu0 0.0
    %446 = vmatprep.subr.mxu0 0.0
    %447 = vmatpush1.msra.mxu0 0.0
    %448 = vmatprep.subr.mxu0 0.0
    %449 = vmatpush1.msra.mxu0 0.0
    %450 = vmatprep.subr.mxu0 0.0
    %451 = vmatpush1.msra.mxu0 0.0
    %452 = vmatprep.subr.mxu0 0.0
    %453 = vmatpush1.msra.mxu0 0.0
    %454 = vmatprep.subr.mxu0 0.0
    %455 = vmatpush1.msra.mxu0 0.0
    %456 = vmatprep.subr.mxu0 0.0
    %457 = vmatpush1.msra.mxu0 0.0
    %458 = vmatprep.subr.mxu0 0.0
    %459 = vmatpush1.msra.mxu0 0.0
    %460 = vmatprep.subr.mxu0 0.0
    %461 = vmatpush1.msra.mxu0 0.0
    %462 = vmatprep.subr.mxu0 0.0
    %463 = vmatpush1.msra.mxu0 0.0
    %464 = vmatprep.subr.mxu0 0.0
    %465 = vmatpush1.msra.mxu0 0.0
    %466 = vmatprep.subr.mxu0 0.0
    %467 = vmatpush1.msra.mxu0 0.0
    %468 = vmatprep.subr.mxu0 0.0
    %469 = vmatpush1.msra.mxu0 0.0
    %470 = vmatprep.subr.mxu0 0.0
    %471 = vmatpush1.msra.mxu0 0.0
    %472 = vmatprep.subr.mxu0 0.0
    %473 = vmatpush1.msra.mxu0 0.0
    %474 = vmatprep.subr.mxu0 0.0
    %475 = vmatpush1.msra.mxu0 0.0
    %476 = vmatprep.subr.mxu0 0.0
    %477 = vmatpush1.msra.mxu0 0.0
    %478 = vmatprep.subr.mxu0 0.0
    %479 = vmatpush1.msra.mxu0 0.0
    %480 = vmatprep.subr.mxu0 0.0
    %481 = vmatpush1.msra.mxu0 0.0
    %482 = vmatprep.subr.mxu0 0.0
    %483 = vmatpush1.msra.mxu0 0.0
    %484 = vmatprep.subr.mxu0 0.0
    %485 = vmatpush1.msra.mxu0 0.0
    %486 = vmatprep.subr.mxu0 0.0
    %487 = vmatpush1.msra.mxu0 0.0
    %488 = vmatprep.subr.mxu0 0.0
    %489 = vmatpush1.msra.mxu0 0.0
    %490 = vmatprep.subr.mxu0 0.0
    %491 = vmatpush1.msra.mxu0 0.0
    %492 = vmatprep.mubr.f32.mxu0 0.0
    %493 = vmatmul.mubr.f32.gmra.mrb[0].mxu0 %v426
    %v494 = vpop.f32.mrb[0].mxu0
    %v495 = vadd.f32 %v422, %v494
    %v496 = vpop.f32.mrb[0].mxu0
    %497 = vdwg.mxu0
    %s498 = scalar_lea.vmem %s2, 16
    %v499 = vld [vmem:[%s498] sm:$0xff]
    %500 = vrot.lane.b32.xlu0 %v344, 126
    %v501 = vpop.permute.xlu0 %500
    %v504 = vsel %vm351, %v499, 0
    %506 = vmatprep.subr.mxu0 0.0
    %507 = vmatpush1.msra.mxu0 %v501
    %508 = vmatprep.subr.mxu0 0.0
    %509 = vmatpush1.msra.mxu0 0.0
    %510 = vmatprep.subr.mxu0 0.0
    %511 = vmatpush1.msra.mxu0 0.0
    %512 = vmatprep.subr.mxu0 0.0
    %513 = vmatpush1.msra.mxu0 0.0
    %514 = vmatprep.subr.mxu0 0.0
    %515 = vmatpush1.msra.mxu0 0.0
    %516 = vmatprep.subr.mxu0 0.0
    %517 = vmatpush1.msra.mxu0 0.0
    %518 = vmatprep.subr.mxu0 0.0
    %519 = vmatpush1.msra.mxu0 0.0
    %520 = vmatprep.subr.mxu0 0.0
    %521 = vmatpush1.msra.mxu0 0.0
    %522 = vmatprep.subr.mxu0 0.0
    %523 = vmatpush1.msra.mxu0 0.0
    %524 = vmatprep.subr.mxu0 0.0
    %525 = vmatpush1.msra.mxu0 0.0
    %526 = vmatprep.subr.mxu0 0.0
    %527 = vmatpush1.msra.mxu0 0.0
    %528 = vmatprep.subr.mxu0 0.0
    %529 = vmatpush1.msra.mxu0 0.0
    %530 = vmatprep.subr.mxu0 0.0
    %531 = vmatpush1.msra.mxu0 0.0
    %532 = vmatprep.subr.mxu0 0.0
    %533 = vmatpush1.msra.mxu0 0.0
    %534 = vmatprep.subr.mxu0 0.0
    %535 = vmatpush1.msra.mxu0 0.0
    %536 = vmatprep.subr.mxu0 0.0
    %537 = vmatpush1.msra.mxu0 0.0
    %538 = vmatprep.subr.mxu0 0.0
    %539 = vmatpush1.msra.mxu0 0.0
    %540 = vmatprep.subr.mxu0 0.0
    %541 = vmatpush1.msra.mxu0 0.0
    %542 = vmatprep.subr.mxu0 0.0
    %543 = vmatpush1.msra.mxu0 0.0
    %544 = vmatprep.subr.mxu0 0.0
    %545 = vmatpush1.msra.mxu0 0.0
    %546 = vmatprep.subr.mxu0 0.0
    %547 = vmatpush1.msra.mxu0 0.0
    %548 = vmatprep.subr.mxu0 0.0
    %549 = vmatpush1.msra.mxu0 0.0
    %550 = vmatprep.subr.mxu0 0.0
    %551 = vmatpush1.msra.mxu0 0.0
    %552 = vmatprep.subr.mxu0 0.0
    %553 = vmatpush1.msra.mxu0 0.0
    %554 = vmatprep.subr.mxu0 0.0
    %555 = vmatpush1.msra.mxu0 0.0
    %556 = vmatprep.subr.mxu0 0.0
    %557 = vmatpush1.msra.mxu0 0.0
    %558 = vmatprep.subr.mxu0 0.0
    %559 = vmatpush1.msra.mxu0 0.0
    %560 = vmatprep.subr.mxu0 0.0
    %561 = vmatpush1.msra.mxu0 0.0
    %562 = vmatprep.subr.mxu0 0.0
    %563 = vmatpush1.msra.mxu0 0.0
    %564 = vmatprep.subr.mxu0 0.0
    %565 = vmatpush1.msra.mxu0 0.0
    %566 = vmatprep.subr.mxu0 0.0
    %567 = vmatpush1.msra.mxu0 0.0
    %568 = vmatprep.subr.mxu0 0.0
    %569 = vmatpush1.msra.mxu0 0.0
    %570 = vmatprep.mubr.f32.mxu0 0.0
    %571 = vmatmul.mubr.f32.gmra.mrb[0].mxu0 %v504
    %v572 = vpop.f32.mrb[0].mxu0
    %v573 = vadd.f32 0.0, %v572
    %v574 = vpop.f32.mrb[0].mxu0
    %575 = vdwg.mxu0
    %v576 = vadd.f32 %v495, %v573
    %v577 = vmul.f32 %v576, %v55
    %v578 = vsel %vm303, %v577, 0.0
    %579 = vadd.xlane.f32.xlu0 %v578
    %v580 = vpop.xlane.xlu0 %579
    %v581 = vmul.f32 %v577, %v576
    %v582 = vsel %vm303, %v581, 0.0
    %583 = vadd.xlane.f32.xlu0 %v582
    %v584 = vpop.xlane.xlu0 %583
    %v585 = vmul.f32 %v580, 0.041666668
    %v586 = vmul.f32 %v584, 0.041666668
    %v587 = vmul.f32 %v585, %v585
    %v588 = vsub.f32 %v586, %v587
    %v589 = vmax.f32 %v588, 0.0
    %v590 = vadd.f32 %v589, 1e-05
    %v591 = vrsqrt.pop %v590
    %v592 = vmul.f32 %v35, %v591
    %v593 = vmul.f32 %v585, %v592
    %595 = vrot.lane.b32.xlu0 %v593, 1
    %v596 = vpop.permute.xlu0 %595
    %v598 = vsub.f32 %v35, %v596
    %600 = vset.pattern.permute.xlu0 2
    %601 = vperm.xlu0 %600, %v592
    %v602 = vpop.permute.xlu0 %601
    %v604 = vmul.f32 %v576, %v602
    %606 = vset.pattern.permute.xlu0 3
    %607 = vperm.xlu0 %606, %v598
    %v608 = vpop.permute.xlu0 %607
    %v610 = vadd.f32 %v604, %v608
    %v612 = vsel %vm351, %v34, 0
    %614 = vmatprep.subr.mxu0 0.0
    %615 = vmatpush1.msra.mxu0 %v610
    %616 = vmatprep.subr.mxu0 0.0
    %617 = vmatpush1.msra.mxu0 0.0
    %618 = vmatprep.subr.mxu0 0.0
    %619 = vmatpush1.msra.mxu0 0.0
    %620 = vmatprep.subr.mxu0 0.0
    %621 = vmatpush1.msra.mxu0 0.0
    %622 = vmatprep.subr.mxu0 0.0
    %623 = vmatpush1.msra.mxu0 0.0
    %624 = vmatprep.subr.mxu0 0.0
    %625 = vmatpush1.msra.mxu0 0.0
    %626 = vmatprep.subr.mxu0 0.0
    %627 = vmatpush1.msra.mxu0 0.0
    %628 = vmatprep.subr.mxu0 0.0
    %629 = vmatpush1.msra.mxu0 0.0
    %630 = vmatprep.subr.mxu0 0.0
    %631 = vmatpush1.msra.mxu0 0.0
    %632 = vmatprep.subr.mxu0 0.0
    %633 = vmatpush1.msra.mxu0 0.0
    %634 = vmatprep.subr.mxu0 0.0
    %635 = vmatpush1.msra.mxu0 0.0
    %636 = vmatprep.subr.mxu0 0.0
    %637 = vmatpush1.msra.mxu0 0.0
    %638 = vmatprep.subr.mxu0 0.0
    %639 = vmatpush1.msra.mxu0 0.0
    %640 = vmatprep.subr.mxu0 0.0
    %641 = vmatpush1.msra.mxu0 0.0
    %642 = vmatprep.subr.mxu0 0.0
    %643 = vmatpush1.msra.mxu0 0.0
    %644 = vmatprep.subr.mxu0 0.0
    %645 = vmatpush1.msra.mxu0 0.0
    %646 = vmatprep.subr.mxu0 0.0
    %647 = vmatpush1.msra.mxu0 0.0
    %648 = vmatprep.subr.mxu0 0.0
    %649 = vmatpush1.msra.mxu0 0.0
    %650 = vmatprep.subr.mxu0 0.0
    %651 = vmatpush1.msra.mxu0 0.0
    %652 = vmatprep.subr.mxu0 0.0
    %653 = vmatpush1.msra.mxu0 0.0
    %654 = vmatprep.subr.mxu0 0.0
    %655 = vmatpush1.msra.mxu0 0.0
    %656 = vmatprep.subr.mxu0 0.0
    %657 = vmatpush1.msra.mxu0 0.0
    %658 = vmatprep.subr.mxu0 0.0
    %659 = vmatpush1.msra.mxu0 0.0
    %660 = vmatprep.subr.mxu0 0.0
    %661 = vmatpush1.msra.mxu0 0.0
    %662 = vmatprep.subr.mxu0 0.0
    %663 = vmatpush1.msra.mxu0 0.0
    %664 = vmatprep.subr.mxu0 0.0
    %665 = vmatpush1.msra.mxu0 0.0
    %666 = vmatprep.subr.mxu0 0.0
    %667 = vmatpush1.msra.mxu0 0.0
    %668 = vmatprep.subr.mxu0 0.0
    %669 = vmatpush1.msra.mxu0 0.0
    %670 = vmatprep.subr.mxu0 0.0
    %671 = vmatpush1.msra.mxu0 0.0
    %672 = vmatprep.subr.mxu0 0.0
    %673 = vmatpush1.msra.mxu0 0.0
    %674 = vmatprep.subr.mxu0 0.0
    %675 = vmatpush1.msra.mxu0 0.0
    %676 = vmatprep.subr.mxu0 0.0
    %677 = vmatpush1.msra.mxu0 0.0
    %678 = vmatprep.mubr.f32.mxu0 0.0
    %679 = vmatmul.mubr.f32.gmra.mrb[0].mxu0 %v612
    %v680 = vpop.f32.mrb[0].mxu0
    %v681 = vadd.f32 0.0, %v680
    %v682 = vpop.f32.mrb[0].mxu0
    %683 = vdwg.mxu0
    %v684 = vmul.f32 %v681, %v55
    %v685 = vsel %vm303, %v684, 0.0
    %686 = vadd.xlane.f32.xlu0 %v685
    %v687 = vpop.xlane.xlu0 %686
    %v688 = vmul.f32 %v684, %v681
    %v689 = vsel %vm303, %v688, 0.0
    %690 = vadd.xlane.f32.xlu0 %v689
    %v691 = vpop.xlane.xlu0 %690
    %v692 = vmul.f32 %v687, 0.041666668
    %v693 = vmul.f32 %v691, 0.041666668
    %v694 = vmul.f32 %v692, %v692
    %v695 = vsub.f32 %v693, %v694
    %v696 = vmax.f32 %v695, 0.0
    %v697 = vadd.f32 %v696, 1e-05
    %v698 = vrsqrt.pop %v697
    %v699 = vmul.f32 %v35, %v698
    %v700 = vmul.f32 %v692, %v699
    %702 = vrot.lane.b32.xlu0 %v700, 1
    %v703 = vpop.permute.xlu0 %702
    %v705 = vsub.f32 %v35, %v703
    %707 = vset.pattern.permute.xlu0 4
    %708 = vperm.xlu0 %707, %v699
    %v709 = vpop.permute.xlu0 %708
    %v711 = vmul.f32 %v681, %v709
    %713 = vset.pattern.permute.xlu0 5
    %714 = vperm.xlu0 %713, %v705
    %v715 = vpop.permute.xlu0 %714
    %v717 = vadd.f32 %v711, %v715
    %v718 = vmax.f32 %v717, 0.0
    %719 = vst.msk [vmem:[#allocation5] sm:$0xff] %vm303, %v718
    // Predicated region
    $region26: #{tpu_custom_call.1} parent=1 // pred_check
      _
    $region27: #{tpu_custom_call.1} parent=1 // pred_check_branch
      %721 = sbr.rel (0) target = $region29
    $region28: #{tpu_custom_call.1} parent=1 // pred_region
      %s723 = ssub.s32 128, 128
      %724 = vsyncadd [#allocation4], %s723
      %s726 = sshll.u32 [#allocation5], 4
      %s727 = int_to_ptr.vmem [resolvable:$true] %s726
      %729 = dma.vmem_to_hbm [thread:$0]  %s727, 128, %s5, [#allocation4]
    $region29: #{tpu_custom_call.1} parent=1 // pred_fallthru
      _
    // Predicated region
    $region30: #{tpu_custom_call.1} parent=1 // pred_check
      _
    $region31: #{tpu_custom_call.1} parent=1 // pred_check_branch
      %731 = sbr.rel (0) target = $region33
    $region32: #{tpu_custom_call.1} parent=1 // pred_region
      %732 = dma.done [#allocation4], 128
    $region33: #{tpu_custom_call.1} parent=1 // pred_fallthru
      _
    %733 = vsyncpa [#allocation3], 1
    %734 = vsyncpa [#allocation4], 1

</llo_original>
